<compile_context>
chip_gen: v6e
topology: v6e:2x2x1
jax: 0.10.0
libtpu: 0.0.40
codegen_flags: <defaults>
</compile_context>

<pallas_src>
import math
import numpy as np
import jax
import jax.numpy as jnp
from jax.experimental import pallas as pl
from jax.experimental.pallas import tpu as pltpu

PAD = 128                # lane width for every hidden feature dimension
DEFAULT_BLOCK_B = 4096   # batch rows per grid step (amortizes ~0.35 us/step overhead)
MAX_BLOCK_B = 8192       # cap for v7x's 64 MiB per-TC VMEM


def _round_up(x, m):
    return (x + m - 1) // m * m


def _choose_tile(bsz, block_b):
    """Adaptive batch tile: multiple of 8, <= cap, minimal over-padding."""
    bsz8 = _round_up(bsz, 8)
    cap = _round_up(min(block_b, MAX_BLOCK_B), 8)
    if bsz8 <= cap:
        return bsz8
    n_tiles = -(-bsz8 // cap)
    return _round_up(-(-bsz8 // n_tiles), 8)


def make_generator_kernel(slopes):
    """slopes: per-layer LeakyReLU negative slope (None => no activation)."""
    num_layers = len(slopes)

    def kernel(x_ref, w0_ref, w_ref, b_ref, o_ref):
        # x_ref : (TB, in_pad)      f32
        # w0_ref: (in_pad, 128)     bf16   first layer (narrow K)
        # w_ref : (L-1, 128, 128)   bf16   remaining layers (K padded to 128)
        # b_ref : (L, 1, 128)       f32
        # o_ref : (TB, out_pad)     f32
        lhs = x_ref[...].astype(jnp.bfloat16)
        h = jnp.dot(lhs, w0_ref[...], preferred_element_type=jnp.float32)
        h = h + b_ref[0]                               # (1, 128) broadcasts over batch
        if slopes[0] is not None:
            s0 = slopes[0]
            h = jnp.maximum(h, s0 * h)                 # LeakyReLU (exact for 0<s<1)
        for l in range(1, num_layers):                 # static unroll, L is small
            lhs = h.astype(jnp.bfloat16)               # bf16 carry across layer boundary
            h = jnp.dot(lhs, w_ref[l - 1], preferred_element_type=jnp.float32)
            h = h + b_ref[l]
            s = slopes[l]
            if s is not None:
                h = jnp.maximum(h, s * h)
        o_ref[...] = h[:, :o_ref.shape[-1]]            # only the narrow output lanes

    return kernel


def prepare_params(weights_t, biases, slopes):
    """One-time packing (run at init, NOT per forward call).

    weights_t[l]: (in_l, out_l) effective weight, already transposed (y = x @ W + b)
    biases[l]:    (out_l,)
    """
    L = len(weights_t)
    assert L >= 2
    in_f = weights_t[0].shape[0]
    out_f = weights_t[-1].shape[1]
    assert max(max(w.shape) for w in weights_t) <= PAD
    in_pad = _round_up(in_f, 8)
    out_pad = _round_up(max(out_f, 8), 8)

    W0 = np.zeros((in_pad, PAD), np.float32)
    W0[:in_f, : weights_t[0].shape[1]] = np.asarray(weights_t[0], np.float32)

    W = np.zeros((L - 1, PAD, PAD), np.float32)
    for l in range(1, L):
        i, o = weights_t[l].shape
        W[l - 1, :i, :o] = np.asarray(weights_t[l], np.float32)

    B = np.zeros((L, 1, PAD), np.float32)
    for l, b in enumerate(biases):
        B[l, 0, : b.shape[0]] = np.asarray(b, np.float32)

    return dict(
        W0=jnp.asarray(W0, jnp.bfloat16),    # (in_pad, 128) bf16
        W=jnp.asarray(W, jnp.bfloat16),      # (L-1, 128, 128) bf16, VMEM-resident
        B=jnp.asarray(B, jnp.float32),       # (L, 1, 128) f32
        slopes=tuple(slopes),
        in_features=in_f, in_pad=in_pad,
        out_features=out_f, out_pad=out_pad,
        num_layers=L,
    )


def make_generator(params, block_b=DEFAULT_BLOCK_B):
    W0, W, Bv = params["W0"], params["W"], params["B"]
    slopes = params["slopes"]
    in_f, in_pad = params["in_features"], params["in_pad"]
    out_f, out_pad = params["out_features"], params["out_pad"]
    L = params["num_layers"]
    kernel = make_generator_kernel(slopes)
    weight_bytes = W0.size * 2 + W.size * 2 + Bv.size * 4

    def forward(x):
        bsz = x.shape[0]
        TB = _choose_tile(bsz, block_b)
        Bp = _round_up(bsz, TB)
        # Single tiny host pad: batch to a tile multiple, features to 8 lanes
        # (32 B/row; the old version materialized 512 B/row in HBM).
        xp = jnp.pad(x.astype(jnp.float32), ((0, Bp - bsz), (0, in_pad - in_f)))

        # VMEM: resident weights (x2 slack) + double-buffered in/out tiles +
        # in-kernel f32/bf16 activations + headroom; capped for v7x's 64 MiB.
        io_bytes = 2 * 2 * TB * (in_pad + out_pad) * 4
        act_bytes = 2 * TB * PAD * (4 + 2)
        vmem_bytes = int(min(48 << 20,
                             max(16 << 20,
                                 2 * weight_bytes + io_bytes + act_bytes + (4 << 20))))
        cost = pl.CostEstimate(
            flops=2 * Bp * PAD * (in_pad + (L - 1) * PAD),
            transcendentals=0,
            bytes_accessed=Bp * (in_pad + out_pad) * 4 + weight_bytes,
        )

        out_padded = pl.pallas_call(
            kernel,
            out_shape=jax.ShapeDtypeStruct((Bp, out_pad), jnp.float32),
            grid_spec=pltpu.PrefetchScalarGridSpec(
                num_scalar_prefetch=0,
                grid=(Bp // TB,),
                in_specs=[
                    pl.BlockSpec((TB, in_pad), lambda i: (i, 0)),   # batch tile (pipelined)
                    pl.BlockSpec(W0.shape, lambda i: (0, 0)),       # first-layer weight: resident
                    pl.BlockSpec(W.shape, lambda i: (0, 0, 0)),     # weight stack: resident
                    pl.BlockSpec(Bv.shape, lambda i: (0, 0, 0)),    # biases: resident
                ],
                out_specs=pl.BlockSpec((TB, out_pad), lambda i: (i, 0)),
            ),
            compiler_params=pltpu.CompilerParams(
                dimension_semantics=("parallel",),
                vmem_limit_bytes=vmem_bytes),
            cost_estimate=cost,
        )(xp, W0, W, Bv)
        return out_padded[:bsz, :out_f]

    return jax.jit(forward)


def build_params(key, features, n_layers):
    """Deterministic parameter construction mirroring the module's __init__ shapes."""
    weights_t, biases, slopes = [], [], []

    # --- self.net: EqualizedLinear(features, features) + LeakyReLU(0.2) ---
    for _ in range(n_layers):
        key, k = jax.random.split(key)
        w = jax.random.normal(k, (features, features), jnp.float32)  # [out, in] ~ N(0,1)
        c = 1.0 / math.sqrt(features)                                # EqualizedWeight scale
        weights_t.append((w * c).T)                                  # effective weight, transposed
        biases.append(jnp.zeros((features,), jnp.float32))           # bias = ones * 0.0
        slopes.append(0.2)

    # --- self.model: Linear(2,8)->...->Linear(64,3), LeakyReLU(0.01) between ---
    dims = [(2, 8), (8, 16), (16, 32), (32, 64), (64, 3)]
    for li, (fin, fout) in enumerate(dims):
        key, kw = jax.random.split(key)
        key, kb = jax.random.split(key)
        bound = 1.0 / math.sqrt(fin)
        w = jax.random.uniform(kw, (fout, fin), jnp.float32, -bound, bound)
        b = jax.random.uniform(kb, (fout,), jnp.float32, -bound, bound)
        weights_t.append(w.T)
        biases.append(b)
        slopes.append(0.01 if li < len(dims) - 1 else None)  # no activation after last layer

    return weights_t, biases, slopes


def reference_forward(x, weights_t, biases, slopes):
    """Pure-JAX reference using the same mixed precision as the kernel
    (bf16 matmul operands, f32 accumulation / bias add / LeakyReLU)."""
    h = jnp.asarray(x, jnp.float32)
    for wt, b, s in zip(weights_t, biases, slopes):
        h = jnp.dot(h.astype(jnp.bfloat16), jnp.asarray(wt, jnp.bfloat16),
                    preferred_element_type=jnp.float32)
        h = h + jnp.asarray(b, jnp.float32)
        if s is not None:
            h = jnp.maximum(h, s * h)
    return h


if __name__ == "__main__":
    features = 2   # must be 2 for self.model's Linear(2, 8) input
    n_layers = 3
    batch = 33     # non-multiple of 8 -> exercises batch padding

    key = jax.random.PRNGKey(0)
    key, kx = jax.random.split(key)
    x = jax.random.normal(kx, (batch, features), jnp.float32)

    weights_t, biases, slopes = build_params(key, features, n_layers)
    params = prepare_params(weights_t, biases, slopes)   # one-time packing at init

    ref = reference_forward(x, weights_t, biases, slopes)

    # Small batch tile so the toy test exercises a multi-step pipelined grid.
    forward_small = make_generator(params, block_b=16)
    out = jax.block_until_ready(forward_small(x))
    np.testing.assert_allclose(np.asarray(out), np.asarray(ref), rtol=1e-3, atol=1e-3)
    assert out.shape == (batch, 3)

    # Default (production) tile path: single grid step for this small batch.
    forward_default = make_generator(params)
    out2 = jax.block_until_ready(forward_default(x))
    np.testing.assert_allclose(np.asarray(out2), np.asarray(ref), rtol=1e-3, atol=1e-3)

    print("KERNEL_OK")
</pallas_src>

<mosaic_0001>
module attributes {stable_mosaic.version = 11 : i64} {
  func.func @kernel(%arg0: i32, %arg1: memref<16x8xf32, #tpu.memory_space<vmem>>, %arg2: memref<8x128xbf16, #tpu.memory_space<vmem>>, %arg3: memref<7x128x128xbf16, #tpu.memory_space<vmem>>, %arg4: memref<8x1x128xf32, #tpu.memory_space<vmem>>, %arg5: memref<16x8xf32, #tpu.memory_space<vmem>>) attributes {dimension_semantics = [#tpu.dimension_semantics<parallel>], iteration_bounds = array<i64: 3>, scalar_prefetch = 0 : i64, scratch_operands = 0 : i64, tpu.core_type = #tpu.core_type<tc>, window_params = [{transform_indices = @transform_0, window_bounds = array<i64: 16, 8>}, {pipeline_mode = #tpu.pipeline_mode<synchronous>, transform_indices = @transform_1, window_bounds = array<i64: 8, 128>}, {pipeline_mode = #tpu.pipeline_mode<synchronous>, transform_indices = @transform_2, window_bounds = array<i64: 7, 128, 128>}, {pipeline_mode = #tpu.pipeline_mode<synchronous>, transform_indices = @transform_3, window_bounds = array<i64: 8, 1, 128>}, {transform_indices = @transform_4, window_bounds = array<i64: 16, 8>}]} {
    %c0 = arith.constant 0 : index
    %c0_0 = arith.constant 0 : index
    %0 = vector.load %arg1[%c0, %c0_0] : memref<16x8xf32, #tpu.memory_space<vmem>>, vector<16x8xf32>
    %1 = arith.truncf %0 : vector<16x8xf32> to vector<16x8xbf16>
    %c0_1 = arith.constant 0 : index
    %c0_2 = arith.constant 0 : index
    %2 = vector.load %arg2[%c0_1, %c0_2] : memref<8x128xbf16, #tpu.memory_space<vmem>>, vector<8x128xbf16>
    %cst = arith.constant dense<0.000000e+00> : vector<16x128xf32>
    %3 = tpu.matmul %1, %2, %cst {dimension_numbers = #tpu.dot_dimension_numbers<[1], [0], [0], [1], [0, 0, 1, 1], [], []>} : vector<16x8xbf16>, vector<8x128xbf16>, vector<16x128xf32> -> vector<16x128xf32>
    %c0_3 = arith.constant 0 : index
    %c0_4 = arith.constant 0 : index
    %c0_5 = arith.constant 0 : index
    %4 = vector.load %arg4[%c0_3, %c0_4, %c0_5] : memref<8x1x128xf32, #tpu.memory_space<vmem>>, vector<1x1x128xf32>
    %5 = vector.shape_cast %4 : vector<1x1x128xf32> to vector<1x128xf32>
    %6 = vector.broadcast %5 : vector<1x128xf32> to vector<16x128xf32>
    %7 = arith.addf %3, %6 : vector<16x128xf32>
    %cst_6 = arith.constant 2.000000e-01 : f32
    %8 = vector.broadcast %cst_6 : f32 to vector<16x128xf32>
    %9 = arith.mulf %8, %7 : vector<16x128xf32>
    %10 = arith.maximumf %7, %9 : vector<16x128xf32>
    %11 = arith.truncf %10 : vector<16x128xf32> to vector<16x128xbf16>
    %c0_7 = arith.constant 0 : index
    %c0_8 = arith.constant 0 : index
    %c0_9 = arith.constant 0 : index
    %12 = vector.load %arg3[%c0_7, %c0_8, %c0_9] : memref<7x128x128xbf16, #tpu.memory_space<vmem>>, vector<1x128x128xbf16>
    %13 = vector.shape_cast %12 : vector<1x128x128xbf16> to vector<128x128xbf16>
    %cst_10 = arith.constant dense<0.000000e+00> : vector<16x128xf32>
    %14 = tpu.matmul %11, %13, %cst_10 {dimension_numbers = #tpu.dot_dimension_numbers<[1], [0], [0], [1], [0, 0, 1, 1], [], []>} : vector<16x128xbf16>, vector<128x128xbf16>, vector<16x128xf32> -> vector<16x128xf32>
    %c1 = arith.constant 1 : index
    %c0_11 = arith.constant 0 : index
    %c0_12 = arith.constant 0 : index
    %15 = vector.load %arg4[%c1, %c0_11, %c0_12] : memref<8x1x128xf32, #tpu.memory_space<vmem>>, vector<1x1x128xf32>
    %16 = vector.shape_cast %15 : vector<1x1x128xf32> to vector<1x128xf32>
    %17 = vector.broadcast %16 : vector<1x128xf32> to vector<16x128xf32>
    %18 = arith.addf %14, %17 : vector<16x128xf32>
    %cst_13 = arith.constant 2.000000e-01 : f32
    %19 = vector.broadcast %cst_13 : f32 to vector<16x128xf32>
    %20 = arith.mulf %19, %18 : vector<16x128xf32>
    %21 = arith.maximumf %18, %20 : vector<16x128xf32>
    %22 = arith.truncf %21 : vector<16x128xf32> to vector<16x128xbf16>
    %c1_14 = arith.constant 1 : index
    %c0_15 = arith.constant 0 : index
    %c0_16 = arith.constant 0 : index
    %23 = vector.load %arg3[%c1_14, %c0_15, %c0_16] : memref<7x128x128xbf16, #tpu.memory_space<vmem>>, vector<1x128x128xbf16>
    %24 = vector.shape_cast %23 : vector<1x128x128xbf16> to vector<128x128xbf16>
    %cst_17 = arith.constant dense<0.000000e+00> : vector<16x128xf32>
    %25 = tpu.matmul %22, %24, %cst_17 {dimension_numbers = #tpu.dot_dimension_numbers<[1], [0], [0], [1], [0, 0, 1, 1], [], []>} : vector<16x128xbf16>, vector<128x128xbf16>, vector<16x128xf32> -> vector<16x128xf32>
    %c2 = arith.constant 2 : index
    %c0_18 = arith.constant 0 : index
    %c0_19 = arith.constant 0 : index
    %26 = vector.load %arg4[%c2, %c0_18, %c0_19] : memref<8x1x128xf32, #tpu.memory_space<vmem>>, vector<1x1x128xf32>
    %27 = vector.shape_cast %26 : vector<1x1x128xf32> to vector<1x128xf32>
    %28 = vector.broadcast %27 : vector<1x128xf32> to vector<16x128xf32>
    %29 = arith.addf %25, %28 : vector<16x128xf32>
    %cst_20 = arith.constant 2.000000e-01 : f32
    %30 = vector.broadcast %cst_20 : f32 to vector<16x128xf32>
    %31 = arith.mulf %30, %29 : vector<16x128xf32>
    %32 = arith.maximumf %29, %31 : vector<16x128xf32>
    %33 = arith.truncf %32 : vector<16x128xf32> to vector<16x128xbf16>
    %c2_21 = arith.constant 2 : index
    %c0_22 = arith.constant 0 : index
    %c0_23 = arith.constant 0 : index
    %34 = vector.load %arg3[%c2_21, %c0_22, %c0_23] : memref<7x128x128xbf16, #tpu.memory_space<vmem>>, vector<1x128x128xbf16>
    %35 = vector.shape_cast %34 : vector<1x128x128xbf16> to vector<128x128xbf16>
    %cst_24 = arith.constant dense<0.000000e+00> : vector<16x128xf32>
    %36 = tpu.matmul %33, %35, %cst_24 {dimension_numbers = #tpu.dot_dimension_numbers<[1], [0], [0], [1], [0, 0, 1, 1], [], []>} : vector<16x128xbf16>, vector<128x128xbf16>, vector<16x128xf32> -> vector<16x128xf32>
    %c3 = arith.constant 3 : index
    %c0_25 = arith.constant 0 : index
    %c0_26 = arith.constant 0 : index
    %37 = vector.load %arg4[%c3, %c0_25, %c0_26] : memref<8x1x128xf32, #tpu.memory_space<vmem>>, vector<1x1x128xf32>
    %38 = vector.shape_cast %37 : vector<1x1x128xf32> to vector<1x128xf32>
    %39 = vector.broadcast %38 : vector<1x128xf32> to vector<16x128xf32>
    %40 = arith.addf %36, %39 : vector<16x128xf32>
    %cst_27 = arith.constant 0.00999999977 : f32
    %41 = vector.broadcast %cst_27 : f32 to vector<16x128xf32>
    %42 = arith.mulf %41, %40 : vector<16x128xf32>
    %43 = arith.maximumf %40, %42 : vector<16x128xf32>
    %44 = arith.truncf %43 : vector<16x128xf32> to vector<16x128xbf16>
    %c3_28 = arith.constant 3 : index
    %c0_29 = arith.constant 0 : index
    %c0_30 = arith.constant 0 : index
    %45 = vector.load %arg3[%c3_28, %c0_29, %c0_30] : memref<7x128x128xbf16, #tpu.memory_space<vmem>>, vector<1x128x128xbf16>
    %46 = vector.shape_cast %45 : vector<1x128x128xbf16> to vector<128x128xbf16>
    %cst_31 = arith.constant dense<0.000000e+00> : vector<16x128xf32>
    %47 = tpu.matmul %44, %46, %cst_31 {dimension_numbers = #tpu.dot_dimension_numbers<[1], [0], [0], [1], [0, 0, 1, 1], [], []>} : vector<16x128xbf16>, vector<128x128xbf16>, vector<16x128xf32> -> vector<16x128xf32>
    %c4 = arith.constant 4 : index
    %c0_32 = arith.constant 0 : index
    %c0_33 = arith.constant 0 : index
    %48 = vector.load %arg4[%c4, %c0_32, %c0_33] : memref<8x1x128xf32, #tpu.memory_space<vmem>>, vector<1x1x128xf32>
    %49 = vector.shape_cast %48 : vector<1x1x128xf32> to vector<1x128xf32>
    %50 = vector.broadcast %49 : vector<1x128xf32> to vector<16x128xf32>
    %51 = arith.addf %47, %50 : vector<16x128xf32>
    %cst_34 = arith.constant 0.00999999977 : f32
    %52 = vector.broadcast %cst_34 : f32 to vector<16x128xf32>
    %53 = arith.mulf %52, %51 : vector<16x128xf32>
    %54 = arith.maximumf %51, %53 : vector<16x128xf32>
    %55 = arith.truncf %54 : vector<16x128xf32> to vector<16x128xbf16>
    %c4_35 = arith.constant 4 : index
    %c0_36 = arith.constant 0 : index
    %c0_37 = arith.constant 0 : index
    %56 = vector.load %arg3[%c4_35, %c0_36, %c0_37] : memref<7x128x128xbf16, #tpu.memory_space<vmem>>, vector<1x128x128xbf16>
    %57 = vector.shape_cast %56 : vector<1x128x128xbf16> to vector<128x128xbf16>
    %cst_38 = arith.constant dense<0.000000e+00> : vector<16x128xf32>
    %58 = tpu.matmul %55, %57, %cst_38 {dimension_numbers = #tpu.dot_dimension_numbers<[1], [0], [0], [1], [0, 0, 1, 1], [], []>} : vector<16x128xbf16>, vector<128x128xbf16>, vector<16x128xf32> -> vector<16x128xf32>
    %c5 = arith.constant 5 : index
    %c0_39 = arith.constant 0 : index
    %c0_40 = arith.constant 0 : index
    %59 = vector.load %arg4[%c5, %c0_39, %c0_40] : memref<8x1x128xf32, #tpu.memory_space<vmem>>, vector<1x1x128xf32>
    %60 = vector.shape_cast %59 : vector<1x1x128xf32> to vector<1x128xf32>
    %61 = vector.broadcast %60 : vector<1x128xf32> to vector<16x128xf32>
    %62 = arith.addf %58, %61 : vector<16x128xf32>
    %cst_41 = arith.constant 0.00999999977 : f32
    %63 = vector.broadcast %cst_41 : f32 to vector<16x128xf32>
    %64 = arith.mulf %63, %62 : vector<16x128xf32>
    %65 = arith.maximumf %62, %64 : vector<16x128xf32>
    %66 = arith.truncf %65 : vector<16x128xf32> to vector<16x128xbf16>
    %c5_42 = arith.constant 5 : index
    %c0_43 = arith.constant 0 : index
    %c0_44 = arith.constant 0 : index
    %67 = vector.load %arg3[%c5_42, %c0_43, %c0_44] : memref<7x128x128xbf16, #tpu.memory_space<vmem>>, vector<1x128x128xbf16>
    %68 = vector.shape_cast %67 : vector<1x128x128xbf16> to vector<128x128xbf16>
    %cst_45 = arith.constant dense<0.000000e+00> : vector<16x128xf32>
    %69 = tpu.matmul %66, %68, %cst_45 {dimension_numbers = #tpu.dot_dimension_numbers<[1], [0], [0], [1], [0, 0, 1, 1], [], []>} : vector<16x128xbf16>, vector<128x128xbf16>, vector<16x128xf32> -> vector<16x128xf32>
    %c6 = arith.constant 6 : index
    %c0_46 = arith.constant 0 : index
    %c0_47 = arith.constant 0 : index
    %70 = vector.load %arg4[%c6, %c0_46, %c0_47] : memref<8x1x128xf32, #tpu.memory_space<vmem>>, vector<1x1x128xf32>
    %71 = vector.shape_cast %70 : vector<1x1x128xf32> to vector<1x128xf32>
    %72 = vector.broadcast %71 : vector<1x128xf32> to vector<16x128xf32>
    %73 = arith.addf %69, %72 : vector<16x128xf32>
    %cst_48 = arith.constant 0.00999999977 : f32
    %74 = vector.broadcast %cst_48 : f32 to vector<16x128xf32>
    %75 = arith.mulf %74, %73 : vector<16x128xf32>
    %76 = arith.maximumf %73, %75 : vector<16x128xf32>
    %77 = arith.truncf %76 : vector<16x128xf32> to vector<16x128xbf16>
    %c6_49 = arith.constant 6 : index
    %c0_50 = arith.constant 0 : index
    %c0_51 = arith.constant 0 : index
    %78 = vector.load %arg3[%c6_49, %c0_50, %c0_51] : memref<7x128x128xbf16, #tpu.memory_space<vmem>>, vector<1x128x128xbf16>
    %79 = vector.shape_cast %78 : vector<1x128x128xbf16> to vector<128x128xbf16>
    %cst_52 = arith.constant dense<0.000000e+00> : vector<16x128xf32>
    %80 = tpu.matmul %77, %79, %cst_52 {dimension_numbers = #tpu.dot_dimension_numbers<[1], [0], [0], [1], [0, 0, 1, 1], [], []>} : vector<16x128xbf16>, vector<128x128xbf16>, vector<16x128xf32> -> vector<16x128xf32>
    %c7 = arith.constant 7 : index
    %c0_53 = arith.constant 0 : index
    %c0_54 = arith.constant 0 : index
    %81 = vector.load %arg4[%c7, %c0_53, %c0_54] : memref<8x1x128xf32, #tpu.memory_space<vmem>>, vector<1x1x128xf32>
    %82 = vector.shape_cast %81 : vector<1x1x128xf32> to vector<1x128xf32>
    %83 = vector.broadcast %82 : vector<1x128xf32> to vector<16x128xf32>
    %84 = arith.addf %80, %83 : vector<16x128xf32>
    %85 = vector.extract_strided_slice %84 {offsets = [0, 0], sizes = [16, 8], strides = [1, 1]} : vector<16x128xf32> to vector<16x8xf32>
    %c0_55 = arith.constant 0 : index
    %c0_56 = arith.constant 0 : index
    %86 = vector.load %arg5[%c0_55, %c0_56] : memref<16x8xf32, #tpu.memory_space<vmem>>, vector<16x8xf32>
    tpu.vector_store %arg5[%c0_55, %c0_56], %85 {strides = array<i32>} : memref<16x8xf32, #tpu.memory_space<vmem>>, vector<16x8xf32>,
    return
  }
  func.func @transform_0(%arg0: i32) -> (i32, i32) {
    %c0_i32 = arith.constant 0 : i32
    %c0_i32_0 = arith.constant 0 : i32
    return %arg0, %c0_i32 : i32, i32
  }
  func.func @transform_1(%arg0: i32) -> (i32, i32) {
    %c0_i32 = arith.constant 0 : i32
    %c0_i32_0 = arith.constant 0 : i32
    %c0_i32_1 = arith.constant 0 : i32
    return %c0_i32, %c0_i32_0 : i32, i32
  }
  func.func @transform_2(%arg0: i32) -> (i32, i32, i32) {
    %c0_i32 = arith.constant 0 : i32
    %c0_i32_0 = arith.constant 0 : i32
    %c0_i32_1 = arith.constant 0 : i32
    %c0_i32_2 = arith.constant 0 : i32
    return %c0_i32, %c0_i32_0, %c0_i32_1 : i32, i32, i32
  }
  func.func @transform_3(%arg0: i32) -> (i32, i32, i32) {
    %c0_i32 = arith.constant 0 : i32
    %c0_i32_0 = arith.constant 0 : i32
    %c0_i32_1 = arith.constant 0 : i32
    %c0_i32_2 = arith.constant 0 : i32
    return %c0_i32, %c0_i32_0, %c0_i32_1 : i32, i32, i32
  }
  func.func @transform_4(%arg0: i32) -> (i32, i32) {
    %c0_i32 = arith.constant 0 : i32
    %c0_i32_0 = arith.constant 0 : i32
    return %arg0, %c0_i32 : i32, i32
  }
}

</mosaic_0001>

<llo_original>
// kernel: forward.1
$region0: #{forward.1}
  #allocation0 [shape = 'u32[]', space=smem, size = 0x4, offset = 0x4, fixed_abs, tag = 'smem constant byte address 0x4 - core index']
  #allocation1 [shape = 'u32[144,128]{1,0:T(1,128)}', space=vmem, size = 0x12000, scoped, tag = 'internal scratch']
  %s0 = inlined_call_operand.vmem [shape: f32[48,8], index: 0, kind: input, shape index: {}]
  %s1 = inlined_call_operand.vmem [shape: bf16[8,128], index: 1, kind: input, shape index: {}]
  %s2 = inlined_call_operand.hbm [shape: bf16[7,128,128], index: 2, kind: input, shape index: {}]
  %s3 = inlined_call_operand.vmem [shape: f32[8,1,128], index: 3, kind: input, shape index: {}]
  %s4 = inlined_call_operand.vmem [shape: f32[48,8], index: 4, kind: output, shape index: {}]
  %s5 = sld [smem:[#allocation0]]
  $region53: #{forward.1} parent=0
    _
  %s7 = ssub.s32 1, %s5
  %s8 = scalar_select 0, %s7, %s5
  $region1: #{forward.1} parent=0
    #allocation2 [shape = 'u8[229376]{0}', space=vmem, size = 0x38000, scoped, tag = 'input window, operand 2, single buffered']
    #allocation3 [shape = 's32[2]{0}', space=sflag, size = 0x8, scoped, tag = 'scoped memory for forward.1']
    %9 = vsyncpa [#allocation3], 0
    loop: start=0, step=1, limit=5
    $region2: #{forward.1} parent=1 // loop_pre_header
      _
    $region3: #{forward.1} parent=1 // loop_header
      %s11 = sphi 0, %s15
      %p12 = scmp.ge.s32.totalorder %s11, 5
      %s21 = sphi 0, %s23
      %s24 = sphi 0, %s21
      %s25 = sphi 0, %s24
      %s41 = sphi 0, %s25
      %s45 = sphi 0, %s45
      %s47 = sphi 0, %s45
      %s48 = sphi 0, %s47
      %s62 = sphi 0, %s48
      %s66 = sphi 0, %s66
      %s68 = sphi 0, %s66
      %s69 = sphi 0, %s68
      %s83 = sphi 0, %s69
      %s87 = sphi 0, %s87
      %s89 = sphi 0, %s87
      %s90 = sphi 0, %s89
      %s104 = sphi 0, %s90
      %s110 = sphi 0, %s112
      %s113 = sphi 0, %s110
      %s114 = sphi 0, %s113
      %s130 = sphi 0, %s114
    $region4: #{forward.1} parent=1 // loop_header_branch
      %14 = sbr.rel (%p12) target = $region8
    $region5: #{forward.1} parent=1 // loop_body
      %s16 = ssub.s32 %s11, 1
      %s17 = ssub.s32 %s11, 2
      %s18 = sadd.s32 %s11, 1
      %s19 = ssub.s32 %s11, %s18
      %p20 = scmp.eq.s32.totalorder %s19, 0
      %s22 = sadd.s32 %s21, 1
      %s23 = scalar_select %p20, %s21, %s22
      %p26 = pneg %p20
      %p27 = scmp.eq.s32.totalorder %s11, 2
      %p28 = por %p26, %p27
      %p29 = scmp.ne.s32.totalorder %s21, %s24
      %p30 = scmp.eq.s32.totalorder %s11, 0
      %p31 = por %p29, %p30
      %p32 = scmp.ne.s32.totalorder %s21, %s24
      %p33 = scmp.eq.s32.totalorder %s16, 2
      %p34 = por %p32, %p33
      %p35 = scmp.ne.s32.totalorder %s24, %s25
      %p36 = scmp.eq.s32.totalorder %s16, 0
      %p37 = por %p35, %p36
      %p38 = scmp.ne.s32.totalorder %s24, %s25
      %p39 = scmp.eq.s32.totalorder %s17, 2
      %p40 = por %p38, %p39
      %p42 = scmp.ne.s32.totalorder %s25, %s41
      %p43 = scmp.eq.s32.totalorder %s17, 0
      %p44 = por %p42, %p43
      %s46 = sadd.s32 %s45, 1
      %p49 = scmp.eq.s32.totalorder %s11, 2
      %p50 = scmp.ne.s32.totalorder %s45, %s47
      %p51 = scmp.eq.s32.totalorder %s11, 0
      %p52 = por %p50, %p51
      %p53 = scmp.ne.s32.totalorder %s45, %s47
      %p54 = scmp.eq.s32.totalorder %s16, 2
      %p55 = por %p53, %p54
      %p56 = scmp.ne.s32.totalorder %s47, %s48
      %p57 = scmp.eq.s32.totalorder %s16, 0
      %p58 = por %p56, %p57
      %p59 = scmp.ne.s32.totalorder %s47, %s48
      %p60 = scmp.eq.s32.totalorder %s17, 2
      %p61 = por %p59, %p60
      %p63 = scmp.ne.s32.totalorder %s48, %s62
      %p64 = scmp.eq.s32.totalorder %s17, 0
      %p65 = por %p63, %p64
      %s67 = sadd.s32 %s66, 1
      %p70 = scmp.eq.s32.totalorder %s11, 2
      %p71 = scmp.ne.s32.totalorder %s66, %s68
      %p72 = scmp.eq.s32.totalorder %s11, 0
      %p73 = por %p71, %p72
      %p74 = scmp.ne.s32.totalorder %s66, %s68
      %p75 = scmp.eq.s32.totalorder %s16, 2
      %p76 = por %p74, %p75
      %p77 = scmp.ne.s32.totalorder %s68, %s69
      %p78 = scmp.eq.s32.totalorder %s16, 0
      %p79 = por %p77, %p78
      %p80 = scmp.ne.s32.totalorder %s68, %s69
      %p81 = scmp.eq.s32.totalorder %s17, 2
      %p82 = por %p80, %p81
      %p84 = scmp.ne.s32.totalorder %s69, %s83
      %p85 = scmp.eq.s32.totalorder %s17, 0
      %p86 = por %p84, %p85
      %s88 = sadd.s32 %s87, 1
      %p91 = scmp.eq.s32.totalorder %s11, 2
      %p92 = scmp.ne.s32.totalorder %s87, %s89
      %p93 = scmp.eq.s32.totalorder %s11, 0
      %p94 = por %p92, %p93
      %p95 = scmp.ne.s32.totalorder %s87, %s89
      %p96 = scmp.eq.s32.totalorder %s16, 2
      %p97 = por %p95, %p96
      %p98 = scmp.ne.s32.totalorder %s89, %s90
      %p99 = scmp.eq.s32.totalorder %s16, 0
      %p100 = por %p98, %p99
      %p101 = scmp.ne.s32.totalorder %s89, %s90
      %p102 = scmp.eq.s32.totalorder %s17, 2
      %p103 = por %p101, %p102
      %p105 = scmp.ne.s32.totalorder %s90, %s104
      %p106 = scmp.eq.s32.totalorder %s17, 0
      %p107 = por %p105, %p106
      %s108 = ssub.s32 %s11, %s18
      %p109 = scmp.eq.s32.totalorder %s108, 0
      %s111 = sadd.s32 %s110, 1
      %s112 = scalar_select %p109, %s110, %s111
      %p115 = pneg %p109
      %p116 = scmp.eq.s32.totalorder %s11, 2
      %p117 = por %p115, %p116
      %p118 = scmp.ne.s32.totalorder %s110, %s113
      %p119 = scmp.eq.s32.totalorder %s11, 0
      %p120 = por %p118, %p119
      %p121 = scmp.ne.s32.totalorder %s110, %s113
      %p122 = scmp.eq.s32.totalorder %s16, 2
      %p123 = por %p121, %p122
      %p124 = scmp.ne.s32.totalorder %s113, %s114
      %p125 = scmp.eq.s32.totalorder %s16, 0
      %p126 = por %p124, %p125
      %p127 = scmp.ne.s32.totalorder %s113, %s114
      %p128 = scmp.eq.s32.totalorder %s17, 2
      %p129 = por %p127, %p128
      %p131 = scmp.ne.s32.totalorder %s114, %s130
      %p132 = scmp.eq.s32.totalorder %s17, 0
      %p133 = por %p131, %p132
      %p134 = scmp.le.s32.totalorder 1, %s11
      %p135 = scmp.lt.s32.totalorder %s11, 4
      %p136 = pnand %p134, %p135
      %p137 = pneg %p136
      // Predicated region
      $region9: #{forward.1} parent=5 // pred_check
        _
      $region10: #{forward.1} parent=5 // pred_check_branch
        %139 = sbr.rel (%p136) target = $region12
      $region11: #{forward.1} parent=5 // pred_region
        %s140 = ssub.s32 %s11, 1
        // Predicated region
        $region13: #{forward.1} parent=11 // pred_check
          %p141 = pneg %p58
        $region14: #{forward.1} parent=11 // pred_check_branch
          %143 = sbr.rel (%p141) target = $region16
        $region15: #{forward.1} parent=11 // pred_region
          _
        $region16: #{forward.1} parent=11 // pred_fallthru
          _
        // Predicated region
        $region17: #{forward.1} parent=11 // pred_check
          %p144 = pneg %p79
        $region18: #{forward.1} parent=11 // pred_check_branch
          %146 = sbr.rel (%p144) target = $region20
        $region19: #{forward.1} parent=11 // pred_region
          %s148 = ssub.s32 7168, 7168
          %149 = vsyncadd [#allocation3], %s148
          %s150 = sshll.u32 [#allocation2], 4
          %s151 = int_to_ptr.vmem [resolvable:$true] %s150
          %156 = dma.hbm_to_vmem [thread:$0]  %s2, 7168, %s151, [#allocation3], 64, 64, 4
        $region20: #{forward.1} parent=11 // pred_fallthru
          _
        // Predicated region
        $region21: #{forward.1} parent=11 // pred_check
          %p157 = pneg %p100
        $region22: #{forward.1} parent=11 // pred_check_branch
          %159 = sbr.rel (%p157) target = $region24
        $region23: #{forward.1} parent=11 // pred_region
          _
        $region24: #{forward.1} parent=11 // pred_fallthru
          _
      $region12: #{forward.1} parent=5 // pred_fallthru
        _
      %p160 = scmp.lt.s32.totalorder %s11, 3
      // Predicated region
      $region25: #{forward.1} parent=5 // pred_check
        %p161 = pneg %p160
      $region26: #{forward.1} parent=5 // pred_check_branch
        %163 = sbr.rel (%p161) target = $region28
      $region27: #{forward.1} parent=5 // pred_region
        // Predicated region
        $region29: #{forward.1} parent=27 // pred_check
          %p164 = pneg %p31
        $region30: #{forward.1} parent=27 // pred_check_branch
          %166 = sbr.rel (%p164) target = $region32
        $region31: #{forward.1} parent=27 // pred_region
          %s167 = smul.u32 2, %s11
          %p168 = scmp.lt.s32.totalorder %s167, 5
          %s169 = scalar_select %p168, %s167, 5
          %s170 = smul.addr %s169, 8
          %s171 = scalar_lea.vmem %s0, %s170
          %s172 = smul.u32 2, %s11
        $region32: #{forward.1} parent=27 // pred_fallthru
          _
      $region28: #{forward.1} parent=5 // pred_fallthru
        _
      %p173 = scmp.le.s32.totalorder 1, %s11
      %p174 = scmp.lt.s32.totalorder %s11, 4
      %p175 = pnand %p173, %p174
      %p176 = pneg %p175
      // Predicated region
      $region33: #{forward.1} parent=5 // pred_check
        _
      $region34: #{forward.1} parent=5 // pred_check_branch
        %178 = sbr.rel (%p175) target = $region36
      $region35: #{forward.1} parent=5 // pred_region
        %s179 = ssub.s32 %s11, 1
        // Predicated region
        $region37: #{forward.1} parent=35 // pred_check
          %p180 = pneg %p79
        $region38: #{forward.1} parent=35 // pred_check_branch
          %182 = sbr.rel (%p180) target = $region40
        $region39: #{forward.1} parent=35 // pred_region
          %183 = dma.done [#allocation3], 7168
        $region40: #{forward.1} parent=35 // pred_fallthru
          _
        %s184 = smul.u32 2, %s16
        %p185 = scmp.lt.s32.totalorder %s184, 5
        %s186 = scalar_select %p185, %s184, 5
        %s187 = smul.addr %s186, 8
        %s188 = scalar_lea.vmem %s0, %s187
        %p189 = pneg %p37
        %p190 = pneg %p34
        %p191 = pneg %p58
        %p192 = pneg %p55
        %p193 = pneg %p79
        %p194 = pneg %p76
        %p195 = pneg %p100
        %p196 = pneg %p97
        %p197 = pneg %p126
        %p198 = pneg %p123
        %s199 = smul.u32 2, %s16
        %p200 = scmp.lt.s32.totalorder %s199, 5
        %s201 = scalar_select %p200, %s199, 5
        %s202 = smul.addr %s201, 8
        %s203 = scalar_lea.vmem %s4, %s202
        %s204 = smul.u32 2, %s16
        %p205 = scmp.lt.s32.totalorder %s204, 5
        %s206 = scalar_select %p205, %s204, 5
        %s207 = smul.addr %s206, 8
        %s208 = scalar_lea.vmem %s0, %s207
        %s209 = smul.u32 2, %s16
        %s210 = smul.u32 2, %s16
        %p211 = scmp.lt.s32.totalorder %s210, 5
        %s212 = scalar_select %p211, %s210, 5
        %s213 = smul.addr %s212, 8
        %s214 = scalar_lea.vmem %s4, %s213
        %s215 = smul.u32 2, %s16
        %v217 = vld [vmem:[%s208] sm:$0xff]
        %v218 = vld [vmem:[%s208 + $0x8] sm:$0xff]
        %v219 = vpack.c.bf16 %v218, %v217
        %v220 = vld [vmem:[%s1] sm:$0xf]
        %v221 = vld [vmem:[%s3] sm:$0x1]
        %v223 = vlaneseq
        %v224 = vshrl.u32 %v223, 7
        %v225 = vsub.s32 0, %v224
        %v226 = vrot.slane %v221, %v225
        %vm228 = vcmask 64512
        %v230 = vsel %vm228, %v219, 0
        %vm232 = vcmask 1043456
        %v234 = vsel %vm232, %v220, 0
        %236 = vmatprep.subr.bf16.mxu0 0
        %237 = vmatpush1.bf16.msra.mxu0 0
        %238 = vmatprep.subr.bf16.mxu0 0
        %239 = vmatpush1.bf16.msra.mxu0 0
        %240 = vmatprep.subr.bf16.mxu0 0
        %241 = vmatpush1.bf16.msra.mxu0 0
        %242 = vmatprep.subr.bf16.mxu0 0
        %243 = vmatpush1.bf16.msra.mxu0 0
        %244 = vmatprep.subr.bf16.mxu0 0
        %245 = vmatpush1.bf16.msra.mxu0 0
        %246 = vmatprep.subr.bf16.mxu0 0
        %247 = vmatpush1.bf16.msra.mxu0 0
        %248 = vmatprep.subr.bf16.mxu0 0
        %249 = vmatpush1.bf16.msra.mxu0 0
        %250 = vmatprep.subr.bf16.mxu0 0
        %251 = vmatpush1.bf16.msra.mxu0 %v234
        %252 = vmatprep.subr.bf16.mxu0 0
        %253 = vmatpush2.bf16.msra.mxu0 0
        %254 = vmatprep.subr.bf16.mxu0 0
        %255 = vmatpush2.bf16.msra.mxu0 0
        %256 = vmatprep.subr.bf16.mxu0 0
        %257 = vmatpush2.bf16.msra.mxu0 0
        %258 = vmatprep.subr.bf16.mxu0 0
        %259 = vmatpush2.bf16.msra.mxu0 0
        %260 = vmatprep.subr.bf16.mxu0 0
        %261 = vmatpush2.bf16.msra.mxu0 0
        %262 = vmatprep.subr.bf16.mxu0 0
        %263 = vmatpush2.bf16.msra.mxu0 0
        %264 = vmatprep.subr.bf16.mxu0 0
        %265 = vmatpush2.bf16.msra.mxu0 0
        %266 = vmatprep.subr.bf16.mxu0 0
        %267 = vmatpush2.bf16.msra.mxu0 0
        %268 = vmatprep.mubr.bf16.mxu0 0
        %269 = vmatmul.mubr.bf16.gmra.mxu0 %v230
        %v270 = vpop.f32.mrf.mxu0
        %v271 = vadd.f32 %v226, %v270
        %v272 = vpop.f32.mrf.mxu0
        %v273 = vpop.f32.mrf.mxu0
        %v274 = vadd.f32 %v226, %v273
        %v275 = vpop.f32.mrf.mxu0
        %276 = vdwg.mxu0
        %v277 = vmul.f32 %v271, 0.2
        %v278 = vmul.f32 %v274, 0.2
        %v279 = vmax.f32 %v271, %v277
        %v280 = vmax.f32 %v274, %v278
        %v281 = vpack.c.bf16 %v280, %v279
        %v282 = vld [vmem:[#allocation2] sm:$0xf]
        %v283 = vld [vmem:[#allocation2 + $0x4] sm:$0xf]
        %v284 = vld [vmem:[#allocation2 + $0x8] sm:$0xf]
        %v285 = vld [vmem:[#allocation2 + $0xc] sm:$0xf]
        %v286 = vld [vmem:[#allocation2 + $0x10] sm:$0xf]
        %v287 = vld [vmem:[#allocation2 + $0x14] sm:$0xf]
        %v288 = vld [vmem:[#allocation2 + $0x18] sm:$0xf]
        %v289 = vld [vmem:[#allocation2 + $0x1c] sm:$0xf]
        %v290 = vld [vmem:[#allocation2 + $0x20] sm:$0xf]
        %v291 = vld [vmem:[#allocation2 + $0x24] sm:$0xf]
        %v292 = vld [vmem:[#allocation2 + $0x28] sm:$0xf]
        %v293 = vld [vmem:[#allocation2 + $0x2c] sm:$0xf]
        %v294 = vld [vmem:[#allocation2 + $0x30] sm:$0xf]
        %v295 = vld [vmem:[#allocation2 + $0x34] sm:$0xf]
        %v296 = vld [vmem:[#allocation2 + $0x38] sm:$0xf]
        %v297 = vld [vmem:[#allocation2 + $0x3c] sm:$0xf]
        %s298 = scalar_lea.vmem %s3, 1
        %v299 = vld [vmem:[%s298] sm:$0x1]
        %v301 = vlaneseq
        %v302 = vshrl.u32 %v301, 7
        %v303 = vsub.s32 0, %v302
        %v304 = vrot.slane %v299, %v303
        %v322 = vunpack.c.l.b16 %v282
        %v323 = vunpack.c.l.b16 %v283
        %v324 = vunpack.c.l.b16 %v284
        %v325 = vunpack.c.l.b16 %v285
        %v326 = vunpack.c.l.b16 %v286
        %v327 = vunpack.c.l.b16 %v287
        %v328 = vunpack.c.l.b16 %v288
        %v329 = vunpack.c.l.b16 %v289
        %v330 = vunpack.c.l.b16 %v290
        %v331 = vunpack.c.l.b16 %v291
        %v332 = vunpack.c.l.b16 %v292
        %v333 = vunpack.c.l.b16 %v293
        %v334 = vunpack.c.l.b16 %v294
        %v335 = vunpack.c.l.b16 %v295
        %v336 = vunpack.c.l.b16 %v296
        %v337 = vunpack.c.l.b16 %v297
        %v338 = vpack.c.b16 %v323, %v322
        %v339 = vpack.c.b16 %v325, %v324
        %v340 = vpack.c.b16 %v327, %v326
        %v341 = vpack.c.b16 %v329, %v328
        %v342 = vpack.c.b16 %v331, %v330
        %v343 = vpack.c.b16 %v333, %v332
        %v344 = vpack.c.b16 %v335, %v334
        %v345 = vpack.c.b16 %v337, %v336
        %354 = vmatprep.subr.bf16.mxu0 0
        %355 = vmatpush1.bf16.msra.mxu0 %v345
        %356 = vmatprep.subr.bf16.mxu0 0
        %357 = vmatpush1.bf16.msra.mxu0 %v344
        %358 = vmatprep.subr.bf16.mxu0 0
        %359 = vmatpush1.bf16.msra.mxu0 %v343
        %360 = vmatprep.subr.bf16.mxu0 0
        %361 = vmatpush1.bf16.msra.mxu0 %v342
        %362 = vmatprep.subr.bf16.mxu0 0
        %363 = vmatpush1.bf16.msra.mxu0 %v341
        %364 = vmatprep.subr.bf16.mxu0 0
        %365 = vmatpush1.bf16.msra.mxu0 %v340
        %366 = vmatprep.subr.bf16.mxu0 0
        %367 = vmatpush1.bf16.msra.mxu0 %v339
        %368 = vmatprep.subr.bf16.mxu0 0
        %369 = vmatpush1.bf16.msra.mxu0 %v338
        %370 = vmatprep.subr.bf16.mxu0 0
        %371 = vmatpush2.bf16.msra.mxu0 0
        %372 = vmatprep.subr.bf16.mxu0 0
        %373 = vmatpush2.bf16.msra.mxu0 0
        %374 = vmatprep.subr.bf16.mxu0 0
        %375 = vmatpush2.bf16.msra.mxu0 0
        %376 = vmatprep.subr.bf16.mxu0 0
        %377 = vmatpush2.bf16.msra.mxu0 0
        %378 = vmatprep.subr.bf16.mxu0 0
        %379 = vmatpush2.bf16.msra.mxu0 0
        %380 = vmatprep.subr.bf16.mxu0 0
        %381 = vmatpush2.bf16.msra.mxu0 0
        %382 = vmatprep.subr.bf16.mxu0 0
        %383 = vmatpush2.bf16.msra.mxu0 0
        %384 = vmatprep.subr.bf16.mxu0 0
        %385 = vmatpush2.bf16.msra.mxu0 0
        %386 = vmatprep.mubr.bf16.mxu0 0
        %387 = vmatmul.mubr.bf16.gmra.mxu0 %v281
        %v388 = vpop.f32.mrf.mxu0
        %v389 = vadd.f32 %v304, %v388
        %v390 = vpop.f32.mrf.mxu0
        %v391 = vpop.f32.mrf.mxu0
        %v392 = vadd.f32 %v304, %v391
        %v393 = vpop.f32.mrf.mxu0
        %394 = vdwg.mxu0
        %v395 = vmul.f32 %v389, 0.2
        %v396 = vmul.f32 %v392, 0.2
        %v397 = vmax.f32 %v389, %v395
        %v398 = vmax.f32 %v392, %v396
        %v399 = vpack.c.bf16 %v398, %v397
        %s400 = scalar_lea.vmem [#allocation2], 64
        %v401 = vld [vmem:[%s400] sm:$0xf]
        %v402 = vld [vmem:[%s400 + $0x4] sm:$0xf]
        %v403 = vld [vmem:[%s400 + $0x8] sm:$0xf]
        %v404 = vld [vmem:[%s400 + $0xc] sm:$0xf]
        %v405 = vld [vmem:[%s400 + $0x10] sm:$0xf]
        %v406 = vld [vmem:[%s400 + $0x14] sm:$0xf]
        %v407 = vld [vmem:[%s400 + $0x18] sm:$0xf]
        %v408 = vld [vmem:[%s400 + $0x1c] sm:$0xf]
        %v409 = vld [vmem:[%s400 + $0x20] sm:$0xf]
        %v410 = vld [vmem:[%s400 + $0x24] sm:$0xf]
        %v411 = vld [vmem:[%s400 + $0x28] sm:$0xf]
        %v412 = vld [vmem:[%s400 + $0x2c] sm:$0xf]
        %v413 = vld [vmem:[%s400 + $0x30] sm:$0xf]
        %v414 = vld [vmem:[%s400 + $0x34] sm:$0xf]
        %v415 = vld [vmem:[%s400 + $0x38] sm:$0xf]
        %v416 = vld [vmem:[%s400 + $0x3c] sm:$0xf]
        %s417 = scalar_lea.vmem %s3, 2
        %v418 = vld [vmem:[%s417] sm:$0x1]
        %v420 = vlaneseq
        %v421 = vshrl.u32 %v420, 7
        %v422 = vsub.s32 0, %v421
        %v423 = vrot.slane %v418, %v422
        %v441 = vunpack.c.l.b16 %v401
        %v442 = vunpack.c.l.b16 %v402
        %v443 = vunpack.c.l.b16 %v403
        %v444 = vunpack.c.l.b16 %v404
        %v445 = vunpack.c.l.b16 %v405
        %v446 = vunpack.c.l.b16 %v406
        %v447 = vunpack.c.l.b16 %v407
        %v448 = vunpack.c.l.b16 %v408
        %v449 = vunpack.c.l.b16 %v409
        %v450 = vunpack.c.l.b16 %v410
        %v451 = vunpack.c.l.b16 %v411
        %v452 = vunpack.c.l.b16 %v412
        %v453 = vunpack.c.l.b16 %v413
        %v454 = vunpack.c.l.b16 %v414
        %v455 = vunpack.c.l.b16 %v415
        %v456 = vunpack.c.l.b16 %v416
        %v457 = vpack.c.b16 %v442, %v441
        %v458 = vpack.c.b16 %v444, %v443
        %v459 = vpack.c.b16 %v446, %v445
        %v460 = vpack.c.b16 %v448, %v447
        %v461 = vpack.c.b16 %v450, %v449
        %v462 = vpack.c.b16 %v452, %v451
        %v463 = vpack.c.b16 %v454, %v453
        %v464 = vpack.c.b16 %v456, %v455
        %473 = vmatprep.subr.bf16.mxu0 0
        %474 = vmatpush1.bf16.msra.mxu0 %v464
        %475 = vmatprep.subr.bf16.mxu0 0
        %476 = vmatpush1.bf16.msra.mxu0 %v463
        %477 = vmatprep.subr.bf16.mxu0 0
        %478 = vmatpush1.bf16.msra.mxu0 %v462
        %479 = vmatprep.subr.bf16.mxu0 0
        %480 = vmatpush1.bf16.msra.mxu0 %v461
        %481 = vmatprep.subr.bf16.mxu0 0
        %482 = vmatpush1.bf16.msra.mxu0 %v460
        %483 = vmatprep.subr.bf16.mxu0 0
        %484 = vmatpush1.bf16.msra.mxu0 %v459
        %485 = vmatprep.subr.bf16.mxu0 0
        %486 = vmatpush1.bf16.msra.mxu0 %v458
        %487 = vmatprep.subr.bf16.mxu0 0
        %488 = vmatpush1.bf16.msra.mxu0 %v457
        %489 = vmatprep.subr.bf16.mxu0 0
        %490 = vmatpush2.bf16.msra.mxu0 0
        %491 = vmatprep.subr.bf16.mxu0 0
        %492 = vmatpush2.bf16.msra.mxu0 0
        %493 = vmatprep.subr.bf16.mxu0 0
        %494 = vmatpush2.bf16.msra.mxu0 0
        %495 = vmatprep.subr.bf16.mxu0 0
        %496 = vmatpush2.bf16.msra.mxu0 0
        %497 = vmatprep.subr.bf16.mxu0 0
        %498 = vmatpush2.bf16.msra.mxu0 0
        %499 = vmatprep.subr.bf16.mxu0 0
        %500 = vmatpush2.bf16.msra.mxu0 0
        %501 = vmatprep.subr.bf16.mxu0 0
        %502 = vmatpush2.bf16.msra.mxu0 0
        %503 = vmatprep.subr.bf16.mxu0 0
        %504 = vmatpush2.bf16.msra.mxu0 0
        %505 = vmatprep.mubr.bf16.mxu0 0
        %506 = vmatmul.mubr.bf16.gmra.mxu0 %v399
        %v507 = vpop.f32.mrf.mxu0
        %v508 = vadd.f32 %v423, %v507
        %v509 = vpop.f32.mrf.mxu0
        %v510 = vpop.f32.mrf.mxu0
        %v511 = vadd.f32 %v423, %v510
        %v512 = vpop.f32.mrf.mxu0
        %513 = vdwg.mxu0
        %v514 = vmul.f32 %v508, 0.2
        %v515 = vmul.f32 %v511, 0.2
        %v516 = vmax.f32 %v508, %v514
        %v517 = vmax.f32 %v511, %v515
        %v518 = vpack.c.bf16 %v517, %v516
        %s519 = scalar_lea.vmem [#allocation2], 128
        %v520 = vld [vmem:[%s519] sm:$0xf]
        %v521 = vld [vmem:[%s519 + $0x4] sm:$0xf]
        %v522 = vld [vmem:[%s519 + $0x8] sm:$0xf]
        %v523 = vld [vmem:[%s519 + $0xc] sm:$0xf]
        %v524 = vld [vmem:[%s519 + $0x10] sm:$0xf]
        %v525 = vld [vmem:[%s519 + $0x14] sm:$0xf]
        %v526 = vld [vmem:[%s519 + $0x18] sm:$0xf]
        %v527 = vld [vmem:[%s519 + $0x1c] sm:$0xf]
        %v528 = vld [vmem:[%s519 + $0x20] sm:$0xf]
        %v529 = vld [vmem:[%s519 + $0x24] sm:$0xf]
        %v530 = vld [vmem:[%s519 + $0x28] sm:$0xf]
        %v531 = vld [vmem:[%s519 + $0x2c] sm:$0xf]
        %v532 = vld [vmem:[%s519 + $0x30] sm:$0xf]
        %v533 = vld [vmem:[%s519 + $0x34] sm:$0xf]
        %v534 = vld [vmem:[%s519 + $0x38] sm:$0xf]
        %v535 = vld [vmem:[%s519 + $0x3c] sm:$0xf]
        %s536 = scalar_lea.vmem %s3, 3
        %v537 = vld [vmem:[%s536] sm:$0x1]
        %v539 = vlaneseq
        %v540 = vshrl.u32 %v539, 7
        %v541 = vsub.s32 0, %v540
        %v542 = vrot.slane %v537, %v541
        %v560 = vunpack.c.l.b16 %v520
        %v561 = vunpack.c.l.b16 %v521
        %v562 = vunpack.c.l.b16 %v522
        %v563 = vunpack.c.l.b16 %v523
        %v564 = vunpack.c.l.b16 %v524
        %v565 = vunpack.c.l.b16 %v525
        %v566 = vunpack.c.l.b16 %v526
        %v567 = vunpack.c.l.b16 %v527
        %v568 = vunpack.c.l.b16 %v528
        %v569 = vunpack.c.l.b16 %v529
        %v570 = vunpack.c.l.b16 %v530
        %v571 = vunpack.c.l.b16 %v531
        %v572 = vunpack.c.l.b16 %v532
        %v573 = vunpack.c.l.b16 %v533
        %v574 = vunpack.c.l.b16 %v534
        %v575 = vunpack.c.l.b16 %v535
        %v576 = vpack.c.b16 %v561, %v560
        %v577 = vpack.c.b16 %v563, %v562
        %v578 = vpack.c.b16 %v565, %v564
        %v579 = vpack.c.b16 %v567, %v566
        %v580 = vpack.c.b16 %v569, %v568
        %v581 = vpack.c.b16 %v571, %v570
        %v582 = vpack.c.b16 %v573, %v572
        %v583 = vpack.c.b16 %v575, %v574
        %592 = vmatprep.subr.bf16.mxu0 0
        %593 = vmatpush1.bf16.msra.mxu0 %v583
        %594 = vmatprep.subr.bf16.mxu0 0
        %595 = vmatpush1.bf16.msra.mxu0 %v582
        %596 = vmatprep.subr.bf16.mxu0 0
        %597 = vmatpush1.bf16.msra.mxu0 %v581
        %598 = vmatprep.subr.bf16.mxu0 0
        %599 = vmatpush1.bf16.msra.mxu0 %v580
        %600 = vmatprep.subr.bf16.mxu0 0
        %601 = vmatpush1.bf16.msra.mxu0 %v579
        %602 = vmatprep.subr.bf16.mxu0 0
        %603 = vmatpush1.bf16.msra.mxu0 %v578
        %604 = vmatprep.subr.bf16.mxu0 0
        %605 = vmatpush1.bf16.msra.mxu0 %v577
        %606 = vmatprep.subr.bf16.mxu0 0
        %607 = vmatpush1.bf16.msra.mxu0 %v576
        %608 = vmatprep.subr.bf16.mxu0 0
        %609 = vmatpush2.bf16.msra.mxu0 0
        %610 = vmatprep.subr.bf16.mxu0 0
        %611 = vmatpush2.bf16.msra.mxu0 0
        %612 = vmatprep.subr.bf16.mxu0 0
        %613 = vmatpush2.bf16.msra.mxu0 0
        %614 = vmatprep.subr.bf16.mxu0 0
        %615 = vmatpush2.bf16.msra.mxu0 0
        %616 = vmatprep.subr.bf16.mxu0 0
        %617 = vmatpush2.bf16.msra.mxu0 0
        %618 = vmatprep.subr.bf16.mxu0 0
        %619 = vmatpush2.bf16.msra.mxu0 0
        %620 = vmatprep.subr.bf16.mxu0 0
        %621 = vmatpush2.bf16.msra.mxu0 0
        %622 = vmatprep.subr.bf16.mxu0 0
        %623 = vmatpush2.bf16.msra.mxu0 0
        %624 = vmatprep.mubr.bf16.mxu0 0
        %625 = vmatmul.mubr.bf16.gmra.mxu0 %v518
        %v626 = vpop.f32.mrf.mxu0
        %v627 = vadd.f32 %v542, %v626
        %v628 = vpop.f32.mrf.mxu0
        %v629 = vpop.f32.mrf.mxu0
        %v630 = vadd.f32 %v542, %v629
        %v631 = vpop.f32.mrf.mxu0
        %632 = vdwg.mxu0
        %v633 = vmul.f32 %v627, 0.01
        %v634 = vmul.f32 %v630, 0.01
        %v635 = vmax.f32 %v627, %v633
        %v636 = vmax.f32 %v630, %v634
        %v637 = vpack.c.bf16 %v636, %v635
        %s638 = scalar_lea.vmem [#allocation2], 192
        %v639 = vld [vmem:[%s638] sm:$0xf]
        %v640 = vld [vmem:[%s638 + $0x4] sm:$0xf]
        %v641 = vld [vmem:[%s638 + $0x8] sm:$0xf]
        %v642 = vld [vmem:[%s638 + $0xc] sm:$0xf]
        %v643 = vld [vmem:[%s638 + $0x10] sm:$0xf]
        %v644 = vld [vmem:[%s638 + $0x14] sm:$0xf]
        %v645 = vld [vmem:[%s638 + $0x18] sm:$0xf]
        %v646 = vld [vmem:[%s638 + $0x1c] sm:$0xf]
        %v647 = vld [vmem:[%s638 + $0x20] sm:$0xf]
        %v648 = vld [vmem:[%s638 + $0x24] sm:$0xf]
        %v649 = vld [vmem:[%s638 + $0x28] sm:$0xf]
        %v650 = vld [vmem:[%s638 + $0x2c] sm:$0xf]
        %v651 = vld [vmem:[%s638 + $0x30] sm:$0xf]
        %v652 = vld [vmem:[%s638 + $0x34] sm:$0xf]
        %v653 = vld [vmem:[%s638 + $0x38] sm:$0xf]
        %v654 = vld [vmem:[%s638 + $0x3c] sm:$0xf]
        %s655 = scalar_lea.vmem %s3, 4
        %v656 = vld [vmem:[%s655] sm:$0x1]
        %v658 = vlaneseq
        %v659 = vshrl.u32 %v658, 7
        %v660 = vsub.s32 0, %v659
        %v661 = vrot.slane %v656, %v660
        %v679 = vunpack.c.l.b16 %v639
        %v680 = vunpack.c.l.b16 %v640
        %v681 = vunpack.c.l.b16 %v641
        %v682 = vunpack.c.l.b16 %v642
        %v683 = vunpack.c.l.b16 %v643
        %v684 = vunpack.c.l.b16 %v644
        %v685 = vunpack.c.l.b16 %v645
        %v686 = vunpack.c.l.b16 %v646
        %v687 = vunpack.c.l.b16 %v647
        %v688 = vunpack.c.l.b16 %v648
        %v689 = vunpack.c.l.b16 %v649
        %v690 = vunpack.c.l.b16 %v650
        %v691 = vunpack.c.l.b16 %v651
        %v692 = vunpack.c.l.b16 %v652
        %v693 = vunpack.c.l.b16 %v653
        %v694 = vunpack.c.l.b16 %v654
        %v695 = vpack.c.b16 %v680, %v679
        %v696 = vpack.c.b16 %v682, %v681
        %v697 = vpack.c.b16 %v684, %v683
        %v698 = vpack.c.b16 %v686, %v685
        %v699 = vpack.c.b16 %v688, %v687
        %v700 = vpack.c.b16 %v690, %v689
        %v701 = vpack.c.b16 %v692, %v691
        %v702 = vpack.c.b16 %v694, %v693
        %711 = vmatprep.subr.bf16.mxu0 0
        %712 = vmatpush1.bf16.msra.mxu0 %v702
        %713 = vmatprep.subr.bf16.mxu0 0
        %714 = vmatpush1.bf16.msra.mxu0 %v701
        %715 = vmatprep.subr.bf16.mxu0 0
        %716 = vmatpush1.bf16.msra.mxu0 %v700
        %717 = vmatprep.subr.bf16.mxu0 0
        %718 = vmatpush1.bf16.msra.mxu0 %v699
        %719 = vmatprep.subr.bf16.mxu0 0
        %720 = vmatpush1.bf16.msra.mxu0 %v698
        %721 = vmatprep.subr.bf16.mxu0 0
        %722 = vmatpush1.bf16.msra.mxu0 %v697
        %723 = vmatprep.subr.bf16.mxu0 0
        %724 = vmatpush1.bf16.msra.mxu0 %v696
        %725 = vmatprep.subr.bf16.mxu0 0
        %726 = vmatpush1.bf16.msra.mxu0 %v695
        %727 = vmatprep.subr.bf16.mxu0 0
        %728 = vmatpush2.bf16.msra.mxu0 0
        %729 = vmatprep.subr.bf16.mxu0 0
        %730 = vmatpush2.bf16.msra.mxu0 0
        %731 = vmatprep.subr.bf16.mxu0 0
        %732 = vmatpush2.bf16.msra.mxu0 0
        %733 = vmatprep.subr.bf16.mxu0 0
        %734 = vmatpush2.bf16.msra.mxu0 0
        %735 = vmatprep.subr.bf16.mxu0 0
        %736 = vmatpush2.bf16.msra.mxu0 0
        %737 = vmatprep.subr.bf16.mxu0 0
        %738 = vmatpush2.bf16.msra.mxu0 0
        %739 = vmatprep.subr.bf16.mxu0 0
        %740 = vmatpush2.bf16.msra.mxu0 0
        %741 = vmatprep.subr.bf16.mxu0 0
        %742 = vmatpush2.bf16.msra.mxu0 0
        %743 = vmatprep.mubr.bf16.mxu0 0
        %744 = vmatmul.mubr.bf16.gmra.mxu0 %v637
        %v745 = vpop.f32.mrf.mxu0
        %v746 = vadd.f32 %v661, %v745
        %v747 = vpop.f32.mrf.mxu0
        %v748 = vpop.f32.mrf.mxu0
        %v749 = vadd.f32 %v661, %v748
        %v750 = vpop.f32.mrf.mxu0
        %751 = vdwg.mxu0
        %v752 = vmul.f32 %v746, 0.01
        %v753 = vmul.f32 %v749, 0.01
        %v754 = vmax.f32 %v746, %v752
        %v755 = vmax.f32 %v749, %v753
        %v756 = vpack.c.bf16 %v755, %v754
        %s757 = scalar_lea.vmem [#allocation2], 256
        %v758 = vld [vmem:[%s757] sm:$0xf]
        %v759 = vld [vmem:[%s757 + $0x4] sm:$0xf]
        %v760 = vld [vmem:[%s757 + $0x8] sm:$0xf]
        %v761 = vld [vmem:[%s757 + $0xc] sm:$0xf]
        %v762 = vld [vmem:[%s757 + $0x10] sm:$0xf]
        %v763 = vld [vmem:[%s757 + $0x14] sm:$0xf]
        %v764 = vld [vmem:[%s757 + $0x18] sm:$0xf]
        %v765 = vld [vmem:[%s757 + $0x1c] sm:$0xf]
        %v766 = vld [vmem:[%s757 + $0x20] sm:$0xf]
        %v767 = vld [vmem:[%s757 + $0x24] sm:$0xf]
        %v768 = vld [vmem:[%s757 + $0x28] sm:$0xf]
        %v769 = vld [vmem:[%s757 + $0x2c] sm:$0xf]
        %v770 = vld [vmem:[%s757 + $0x30] sm:$0xf]
        %v771 = vld [vmem:[%s757 + $0x34] sm:$0xf]
        %v772 = vld [vmem:[%s757 + $0x38] sm:$0xf]
        %v773 = vld [vmem:[%s757 + $0x3c] sm:$0xf]
        %s774 = scalar_lea.vmem %s3, 5
        %v775 = vld [vmem:[%s774] sm:$0x1]
        %v777 = vlaneseq
        %v778 = vshrl.u32 %v777, 7
        %v779 = vsub.s32 0, %v778
        %v780 = vrot.slane %v775, %v779
        %v798 = vunpack.c.l.b16 %v758
        %v799 = vunpack.c.l.b16 %v759
        %v800 = vunpack.c.l.b16 %v760
        %v801 = vunpack.c.l.b16 %v761
        %v802 = vunpack.c.l.b16 %v762
        %v803 = vunpack.c.l.b16 %v763
        %v804 = vunpack.c.l.b16 %v764
        %v805 = vunpack.c.l.b16 %v765
        %v806 = vunpack.c.l.b16 %v766
        %v807 = vunpack.c.l.b16 %v767
        %v808 = vunpack.c.l.b16 %v768
        %v809 = vunpack.c.l.b16 %v769
        %v810 = vunpack.c.l.b16 %v770
        %v811 = vunpack.c.l.b16 %v771
        %v812 = vunpack.c.l.b16 %v772
        %v813 = vunpack.c.l.b16 %v773
        %v814 = vpack.c.b16 %v799, %v798
        %v815 = vpack.c.b16 %v801, %v800
        %v816 = vpack.c.b16 %v803, %v802
        %v817 = vpack.c.b16 %v805, %v804
        %v818 = vpack.c.b16 %v807, %v806
        %v819 = vpack.c.b16 %v809, %v808
        %v820 = vpack.c.b16 %v811, %v810
        %v821 = vpack.c.b16 %v813, %v812
        %830 = vmatprep.subr.bf16.mxu0 0
        %831 = vmatpush1.bf16.msra.mxu0 %v821
        %832 = vmatprep.subr.bf16.mxu0 0
        %833 = vmatpush1.bf16.msra.mxu0 %v820
        %834 = vmatprep.subr.bf16.mxu0 0
        %835 = vmatpush1.bf16.msra.mxu0 %v819
        %836 = vmatprep.subr.bf16.mxu0 0
        %837 = vmatpush1.bf16.msra.mxu0 %v818
        %838 = vmatprep.subr.bf16.mxu0 0
        %839 = vmatpush1.bf16.msra.mxu0 %v817
        %840 = vmatprep.subr.bf16.mxu0 0
        %841 = vmatpush1.bf16.msra.mxu0 %v816
        %842 = vmatprep.subr.bf16.mxu0 0
        %843 = vmatpush1.bf16.msra.mxu0 %v815
        %844 = vmatprep.subr.bf16.mxu0 0
        %845 = vmatpush1.bf16.msra.mxu0 %v814
        %846 = vmatprep.subr.bf16.mxu0 0
        %847 = vmatpush2.bf16.msra.mxu0 0
        %848 = vmatprep.subr.bf16.mxu0 0
        %849 = vmatpush2.bf16.msra.mxu0 0
        %850 = vmatprep.subr.bf16.mxu0 0
        %851 = vmatpush2.bf16.msra.mxu0 0
        %852 = vmatprep.subr.bf16.mxu0 0
        %853 = vmatpush2.bf16.msra.mxu0 0
        %854 = vmatprep.subr.bf16.mxu0 0
        %855 = vmatpush2.bf16.msra.mxu0 0
        %856 = vmatprep.subr.bf16.mxu0 0
        %857 = vmatpush2.bf16.msra.mxu0 0
        %858 = vmatprep.subr.bf16.mxu0 0
        %859 = vmatpush2.bf16.msra.mxu0 0
        %860 = vmatprep.subr.bf16.mxu0 0
        %861 = vmatpush2.bf16.msra.mxu0 0
        %862 = vmatprep.mubr.bf16.mxu0 0
        %863 = vmatmul.mubr.bf16.gmra.mxu0 %v756
        %v864 = vpop.f32.mrf.mxu0
        %v865 = vadd.f32 %v780, %v864
        %v866 = vpop.f32.mrf.mxu0
        %v867 = vpop.f32.mrf.mxu0
        %v868 = vadd.f32 %v780, %v867
        %v869 = vpop.f32.mrf.mxu0
        %870 = vdwg.mxu0
        %v871 = vmul.f32 %v865, 0.01
        %v872 = vmul.f32 %v868, 0.01
        %v873 = vmax.f32 %v865, %v871
        %v874 = vmax.f32 %v868, %v872
        %v875 = vpack.c.bf16 %v874, %v873
        %s876 = scalar_lea.vmem [#allocation2], 320
        %v877 = vld [vmem:[%s876] sm:$0xf]
        %v878 = vld [vmem:[%s876 + $0x4] sm:$0xf]
        %v879 = vld [vmem:[%s876 + $0x8] sm:$0xf]
        %v880 = vld [vmem:[%s876 + $0xc] sm:$0xf]
        %v881 = vld [vmem:[%s876 + $0x10] sm:$0xf]
        %v882 = vld [vmem:[%s876 + $0x14] sm:$0xf]
        %v883 = vld [vmem:[%s876 + $0x18] sm:$0xf]
        %v884 = vld [vmem:[%s876 + $0x1c] sm:$0xf]
        %v885 = vld [vmem:[%s876 + $0x20] sm:$0xf]
        %v886 = vld [vmem:[%s876 + $0x24] sm:$0xf]
        %v887 = vld [vmem:[%s876 + $0x28] sm:$0xf]
        %v888 = vld [vmem:[%s876 + $0x2c] sm:$0xf]
        %v889 = vld [vmem:[%s876 + $0x30] sm:$0xf]
        %v890 = vld [vmem:[%s876 + $0x34] sm:$0xf]
        %v891 = vld [vmem:[%s876 + $0x38] sm:$0xf]
        %v892 = vld [vmem:[%s876 + $0x3c] sm:$0xf]
        %s893 = scalar_lea.vmem %s3, 6
        %v894 = vld [vmem:[%s893] sm:$0x1]
        %v896 = vlaneseq
        %v897 = vshrl.u32 %v896, 7
        %v898 = vsub.s32 0, %v897
        %v899 = vrot.slane %v894, %v898
        %v917 = vunpack.c.l.b16 %v877
        %v918 = vunpack.c.l.b16 %v878
        %v919 = vunpack.c.l.b16 %v879
        %v920 = vunpack.c.l.b16 %v880
        %v921 = vunpack.c.l.b16 %v881
        %v922 = vunpack.c.l.b16 %v882
        %v923 = vunpack.c.l.b16 %v883
        %v924 = vunpack.c.l.b16 %v884
        %v925 = vunpack.c.l.b16 %v885
        %v926 = vunpack.c.l.b16 %v886
        %v927 = vunpack.c.l.b16 %v887
        %v928 = vunpack.c.l.b16 %v888
        %v929 = vunpack.c.l.b16 %v889
        %v930 = vunpack.c.l.b16 %v890
        %v931 = vunpack.c.l.b16 %v891
        %v932 = vunpack.c.l.b16 %v892
        %v933 = vpack.c.b16 %v918, %v917
        %v934 = vpack.c.b16 %v920, %v919
        %v935 = vpack.c.b16 %v922, %v921
        %v936 = vpack.c.b16 %v924, %v923
        %v937 = vpack.c.b16 %v926, %v925
        %v938 = vpack.c.b16 %v928, %v927
        %v939 = vpack.c.b16 %v930, %v929
        %v940 = vpack.c.b16 %v932, %v931
        %949 = vmatprep.subr.bf16.mxu0 0
        %950 = vmatpush1.bf16.msra.mxu0 %v940
        %951 = vmatprep.subr.bf16.mxu0 0
        %952 = vmatpush1.bf16.msra.mxu0 %v939
        %953 = vmatprep.subr.bf16.mxu0 0
        %954 = vmatpush1.bf16.msra.mxu0 %v938
        %955 = vmatprep.subr.bf16.mxu0 0
        %956 = vmatpush1.bf16.msra.mxu0 %v937
        %957 = vmatprep.subr.bf16.mxu0 0
        %958 = vmatpush1.bf16.msra.mxu0 %v936
        %959 = vmatprep.subr.bf16.mxu0 0
        %960 = vmatpush1.bf16.msra.mxu0 %v935
        %961 = vmatprep.subr.bf16.mxu0 0
        %962 = vmatpush1.bf16.msra.mxu0 %v934
        %963 = vmatprep.subr.bf16.mxu0 0
        %964 = vmatpush1.bf16.msra.mxu0 %v933
        %965 = vmatprep.subr.bf16.mxu0 0
        %966 = vmatpush2.bf16.msra.mxu0 0
        %967 = vmatprep.subr.bf16.mxu0 0
        %968 = vmatpush2.bf16.msra.mxu0 0
        %969 = vmatprep.subr.bf16.mxu0 0
        %970 = vmatpush2.bf16.msra.mxu0 0
        %971 = vmatprep.subr.bf16.mxu0 0
        %972 = vmatpush2.bf16.msra.mxu0 0
        %973 = vmatprep.subr.bf16.mxu0 0
        %974 = vmatpush2.bf16.msra.mxu0 0
        %975 = vmatprep.subr.bf16.mxu0 0
        %976 = vmatpush2.bf16.msra.mxu0 0
        %977 = vmatprep.subr.bf16.mxu0 0
        %978 = vmatpush2.bf16.msra.mxu0 0
        %979 = vmatprep.subr.bf16.mxu0 0
        %980 = vmatpush2.bf16.msra.mxu0 0
        %981 = vmatprep.mubr.bf16.mxu0 0
        %982 = vmatmul.mubr.bf16.gmra.mxu0 %v875
        %v983 = vpop.f32.mrf.mxu0
        %v984 = vadd.f32 %v899, %v983
        %v985 = vpop.f32.mrf.mxu0
        %v986 = vpop.f32.mrf.mxu0
        %v987 = vadd.f32 %v899, %v986
        %v988 = vpop.f32.mrf.mxu0
        %989 = vdwg.mxu0
        %v990 = vmul.f32 %v984, 0.01
        %v991 = vmul.f32 %v987, 0.01
        %v992 = vmax.f32 %v984, %v990
        %v993 = vmax.f32 %v987, %v991
        %v994 = vpack.c.bf16 %v993, %v992
        %s995 = scalar_lea.vmem [#allocation2], 384
        %v996 = vld [vmem:[%s995] sm:$0xf]
        %v997 = vld [vmem:[%s995 + $0x4] sm:$0xf]
        %v998 = vld [vmem:[%s995 + $0x8] sm:$0xf]
        %v999 = vld [vmem:[%s995 + $0xc] sm:$0xf]
        %v1000 = vld [vmem:[%s995 + $0x10] sm:$0xf]
        %v1001 = vld [vmem:[%s995 + $0x14] sm:$0xf]
        %v1002 = vld [vmem:[%s995 + $0x18] sm:$0xf]
        %v1003 = vld [vmem:[%s995 + $0x1c] sm:$0xf]
        %v1004 = vld [vmem:[%s995 + $0x20] sm:$0xf]
        %v1005 = vld [vmem:[%s995 + $0x24] sm:$0xf]
        %v1006 = vld [vmem:[%s995 + $0x28] sm:$0xf]
        %v1007 = vld [vmem:[%s995 + $0x2c] sm:$0xf]
        %v1008 = vld [vmem:[%s995 + $0x30] sm:$0xf]
        %v1009 = vld [vmem:[%s995 + $0x34] sm:$0xf]
        %v1010 = vld [vmem:[%s995 + $0x38] sm:$0xf]
        %v1011 = vld [vmem:[%s995 + $0x3c] sm:$0xf]
        %s1012 = scalar_lea.vmem %s3, 7
        %v1013 = vld [vmem:[%s1012] sm:$0x1]
        %v1015 = vlaneseq
        %v1016 = vshrl.u32 %v1015, 7
        %v1017 = vsub.s32 0, %v1016
        %v1018 = vrot.slane %v1013, %v1017
        %v1036 = vunpack.c.l.b16 %v996
        %v1037 = vunpack.c.l.b16 %v997
        %v1038 = vunpack.c.l.b16 %v998
        %v1039 = vunpack.c.l.b16 %v999
        %v1040 = vunpack.c.l.b16 %v1000
        %v1041 = vunpack.c.l.b16 %v1001
        %v1042 = vunpack.c.l.b16 %v1002
        %v1043 = vunpack.c.l.b16 %v1003
        %v1044 = vunpack.c.l.b16 %v1004
        %v1045 = vunpack.c.l.b16 %v1005
        %v1046 = vunpack.c.l.b16 %v1006
        %v1047 = vunpack.c.l.b16 %v1007
        %v1048 = vunpack.c.l.b16 %v1008
        %v1049 = vunpack.c.l.b16 %v1009
        %v1050 = vunpack.c.l.b16 %v1010
        %v1051 = vunpack.c.l.b16 %v1011
        %v1052 = vpack.c.b16 %v1037, %v1036
        %v1053 = vpack.c.b16 %v1039, %v1038
        %v1054 = vpack.c.b16 %v1041, %v1040
        %v1055 = vpack.c.b16 %v1043, %v1042
        %v1056 = vpack.c.b16 %v1045, %v1044
        %v1057 = vpack.c.b16 %v1047, %v1046
        %v1058 = vpack.c.b16 %v1049, %v1048
        %v1059 = vpack.c.b16 %v1051, %v1050
        %1068 = vmatprep.subr.bf16.mxu0 0
        %1069 = vmatpush1.bf16.msra.mxu0 %v1059
        %1070 = vmatprep.subr.bf16.mxu0 0
        %1071 = vmatpush1.bf16.msra.mxu0 %v1058
        %1072 = vmatprep.subr.bf16.mxu0 0
        %1073 = vmatpush1.bf16.msra.mxu0 %v1057
        %1074 = vmatprep.subr.bf16.mxu0 0
        %1075 = vmatpush1.bf16.msra.mxu0 %v1056
        %1076 = vmatprep.subr.bf16.mxu0 0
        %1077 = vmatpush1.bf16.msra.mxu0 %v1055
        %1078 = vmatprep.subr.bf16.mxu0 0
        %1079 = vmatpush1.bf16.msra.mxu0 %v1054
        %1080 = vmatprep.subr.bf16.mxu0 0
        %1081 = vmatpush1.bf16.msra.mxu0 %v1053
        %1082 = vmatprep.subr.bf16.mxu0 0
        %1083 = vmatpush1.bf16.msra.mxu0 %v1052
        %1084 = vmatprep.subr.bf16.mxu0 0
        %1085 = vmatpush2.bf16.msra.mxu0 0
        %1086 = vmatprep.subr.bf16.mxu0 0
        %1087 = vmatpush2.bf16.msra.mxu0 0
        %1088 = vmatprep.subr.bf16.mxu0 0
        %1089 = vmatpush2.bf16.msra.mxu0 0
        %1090 = vmatprep.subr.bf16.mxu0 0
        %1091 = vmatpush2.bf16.msra.mxu0 0
        %1092 = vmatprep.subr.bf16.mxu0 0
        %1093 = vmatpush2.bf16.msra.mxu0 0
        %1094 = vmatprep.subr.bf16.mxu0 0
        %1095 = vmatpush2.bf16.msra.mxu0 0
        %1096 = vmatprep.subr.bf16.mxu0 0
        %1097 = vmatpush2.bf16.msra.mxu0 0
        %1098 = vmatprep.subr.bf16.mxu0 0
        %1099 = vmatpush2.bf16.msra.mxu0 0
        %1100 = vmatprep.mubr.bf16.mxu0 0
        %1101 = vmatmul.mubr.bf16.gmra.mxu0 %v994
        %v1102 = vpop.f32.mrf.mxu0
        %v1103 = vadd.f32 %v1018, %v1102
        %v1104 = vpop.f32.mrf.mxu0
        %v1105 = vpop.f32.mrf.mxu0
        %v1106 = vadd.f32 %v1018, %v1105
        %v1107 = vpop.f32.mrf.mxu0
        %1108 = vdwg.mxu0
        %1109 = vst.msk [vmem:[%s214] sm:$0xff] %vm228, %v1103
        %1110 = vst.msk [vmem:[%s214 + $0x8] sm:$0xff] %vm228, %v1106
        %s1111 = smul.u32 2, %s16
        %p1112 = scmp.lt.s32.totalorder %s1111, 5
        %s1113 = scalar_select %p1112, %s1111, 5
        %s1114 = smul.addr %s1113, 8
        %s1115 = scalar_lea.vmem %s4, %s1114
        // Predicated region
        $region41: #{forward.1} parent=35 // pred_check
          %p1116 = pneg %p123
        $region42: #{forward.1} parent=35 // pred_check_branch
          %1118 = sbr.rel (%p1116) target = $region44
        $region43: #{forward.1} parent=35 // pred_region
          %s1119 = smul.u32 2, %s16
        $region44: #{forward.1} parent=35 // pred_fallthru
          _
      $region36: #{forward.1} parent=5 // pred_fallthru
        _
      %p1120 = scmp.le.s32.totalorder 2, %s11
      // Predicated region
      $region45: #{forward.1} parent=5 // pred_check
        %p1121 = pneg %p1120
      $region46: #{forward.1} parent=5 // pred_check_branch
        %1123 = sbr.rel (%p1121) target = $region48
      $region47: #{forward.1} parent=5 // pred_region
        %s1124 = ssub.s32 %s11, 2
        // Predicated region
        $region49: #{forward.1} parent=47 // pred_check
          %p1125 = pneg %p129
        $region50: #{forward.1} parent=47 // pred_check_branch
          %1127 = sbr.rel (%p1125) target = $region52
        $region51: #{forward.1} parent=47 // pred_region
          %s1128 = smul.u32 2, %s17
          %p1129 = scmp.lt.s32.totalorder %s1128, 5
          %s1130 = scalar_select %p1129, %s1128, 5
          %s1131 = smul.addr %s1130, 8
          %s1132 = scalar_lea.vmem %s4, %s1131
        $region52: #{forward.1} parent=47 // pred_fallthru
          _
      $region48: #{forward.1} parent=5 // pred_fallthru
        _
    $region6: #{forward.1} parent=1 // loop_footer
      %s15 = sadd.s32 1, %s11
    $region7: #{forward.1} parent=1 // loop_footer_branch
      %10 = sbr.rel target = $region3
    $region8: #{forward.1} parent=1 // loop_exit
      _
    %1133 = vsyncpa [#allocation3], 1
    %s1134 = scalar_lea.sflag [#allocation3], 1
    %1135 = vsyncpa %s1134, 1

</llo_original>
